<compile_context>
chip_gen: v6e
topology: v6e:2x2x1
jax: 0.10.0
libtpu: 0.0.40
codegen_flags: <defaults>
</compile_context>

<pallas_src>
import contextlib
import functools

import jax
import jax.numpy as jnp
from jax.experimental import pallas as pl
from jax.experimental.pallas import tpu as pltpu


# ----------------------------------------------------------------------------
# One-off eager probe: pin down the rotation direction of pltpu.roll on the
# active backend so the tap shifts below are convention-proof. Runs OUTSIDE
# any jit trace (and forces eager eval if somehow called under one).
# ----------------------------------------------------------------------------
def _roll_probe_kernel(x_ref, o_ref):
    o_ref[...] = pltpu.roll(x_ref[...], shift=1, axis=1)


@functools.cache
def _pltpu_roll_matches_jnp_roll() -> bool:
    eager = getattr(jax, "ensure_compile_time_eval", contextlib.nullcontext)
    with eager():
        x = jnp.arange(8 * 128, dtype=jnp.float32).reshape(8, 128)
        y = pl.pallas_call(
            _roll_probe_kernel,
            out_shape=jax.ShapeDtypeStruct((8, 128), jnp.float32),
        )(x)
        return bool(jnp.array_equal(y, jnp.roll(x, 1, axis=1)))


# ----------------------------------------------------------------------------
# Fused kernel: 3x3 same-conv + bias + identity shortcut, one image per step.
# ----------------------------------------------------------------------------
def _residual_block_kernel(x_ref, w_ref, b_ref, o_ref, *, H, W,
                           roll_matches_jnp):
    """x_ref: (1, Cin, H*W)   f32  spatially-flattened image (lane-dense)
       w_ref: (9, Cout, Cin)  bf16 per-tap conv weights, tap t = kh*3 + kw
       b_ref: (Cout, 1)       f32  conv bias
       o_ref: (1, Cout, H*W)       output block
    """
    HW = H * W
    Cin = x_ref.shape[1]
    Cout = o_ref.shape[1]

    xf = x_ref[0]                                     # (Cin, HW) f32

    # ---- border masks: computed ONCE, reused across all 9 taps (hoisted) ---
    # Zero "same" padding is realized by masking the rolled copies; no padded
    # tensor is ever materialized.
    p = jax.lax.broadcasted_iota(jnp.int32, (Cin, HW), 1)
    if W & (W - 1) == 0:                 # power-of-two width: pure bit ops
        col = p & (W - 1)
    else:                                # TODO(synk): general-W remainder path
        col = p % W
    row_ok = {-1: p >= W, 0: None, 1: p < (H - 1) * W}
    col_ok = {-1: col >= 1, 0: None, 1: col <= W - 2}

    # ---- per-tap accumulated MXU matmuls: no im2col concat, no 9x temps ----
    acc = jnp.zeros((Cout, HW), jnp.float32)
    for dh in (-1, 0, 1):
        for dw in (-1, 0, 1):
            d = dh * W + dw
            if d == 0:
                tap = xf
            else:
                # tap[p] must equal xf[p + d]  (wrap-around is masked below)
                s = ((-d) if roll_matches_jnp else d) % HW
                tap = pltpu.roll(xf, shift=s, axis=1)     # XLU lane rotation
            rv, cv = row_ok[dh], col_ok[dw]
            if rv is not None and cv is not None:
                valid = rv & cv
            else:
                valid = rv if rv is not None else cv
            if valid is not None:
                tap = jnp.where(valid, tap, 0.0)
            t = (dh + 1) * 3 + (dw + 1)
            acc += jnp.dot(w_ref[t], tap.astype(jnp.bfloat16),
                           preferred_element_type=jnp.float32)

    # f32 epilogue: conv bias + identity shortcut (same VMEM-resident block).
    o_ref[0] = (acc + b_ref[...] + xf).astype(o_ref.dtype)


@functools.partial(jax.jit, static_argnames=("roll_matches_jnp",))
def _residual_block_jit(x_nchw, weight_oihw, bias, *, roll_matches_jnp):
    N, C, H, W = x_nchw.shape
    Cout, Cin, KH, KW = weight_oihw.shape
    assert (Cin, KH, KW) == (C, 3, 3)
    assert Cout == C, "identity shortcut requires Cin == Cout"
    HW = H * W

    # Metadata-only reshape of the feature map: no pad / transpose HBM passes.
    x_flat = x_nchw.reshape(N, C, HW)
    # Weights: (Cout, Cin, 3, 3) -> per-tap (9, Cout, Cin), bf16 for the MXU.
    w_taps = jnp.transpose(weight_oihw, (2, 3, 0, 1)).reshape(9, Cout, Cin)
    w_taps = w_taps.astype(jnp.bfloat16)
    b2 = bias.reshape(Cout, 1).astype(jnp.float32)

    kernel = functools.partial(_residual_block_kernel, H=H, W=W,
                               roll_matches_jnp=roll_matches_jnp)

    itemsize = x_nchw.dtype.itemsize
    out_flat = pl.pallas_call(
        kernel,
        out_shape=jax.ShapeDtypeStruct((N, Cout, HW), x_nchw.dtype),
        grid_spec=pltpu.PrefetchScalarGridSpec(
            num_scalar_prefetch=0,
            grid=(N,),
            in_specs=[
                pl.BlockSpec((1, C, HW), lambda n: (n, 0, 0)),
                pl.BlockSpec((9, Cout, Cin), lambda n: (0, 0, 0)),
                pl.BlockSpec((Cout, 1), lambda n: (0, 0)),
            ],
            out_specs=pl.BlockSpec((1, Cout, HW), lambda n: (n, 0, 0)),
        ),
        compiler_params=pltpu.CompilerParams(
            dimension_semantics=("parallel",)),
        cost_estimate=pl.CostEstimate(
            flops=2 * N * HW * 9 * C * Cout + 2 * N * Cout * HW,
            transcendentals=0,
            bytes_accessed=(N * C * HW * itemsize          # input
                            + N * Cout * HW * itemsize     # output
                            + 9 * Cout * C * 2             # bf16 weights
                            + Cout * 4),                   # bias
        ),
    )(x_flat, w_taps, b2)

    return out_flat.reshape(N, Cout, H, W)


def residual_block(x_nchw, weight_oihw, bias):
    """ResidualBlock(residual=Conv2d(C, C, 3, padding=1), shortcut=Identity()).

    x_nchw      : (N, C, H, W)       PyTorch NCHW layout
    weight_oihw : (Cout, Cin, 3, 3)  PyTorch conv weight layout
    bias        : (Cout,)
    """
    # Probe evaluated eagerly here (concrete bool), then passed as a static.
    return _residual_block_jit(x_nchw, weight_oihw, bias,
                               roll_matches_jnp=_pltpu_roll_matches_jnp_roll())


def _reference(x_nchw, weight_oihw, bias):
    """Pure-JAX reference: conv2d(3x3, same) + bias + identity shortcut."""
    y = jax.lax.conv_general_dilated(
        x_nchw, weight_oihw,
        window_strides=(1, 1), padding="SAME",
        dimension_numbers=("NCHW", "OIHW", "NCHW"))
    y = y + bias.reshape(1, -1, 1, 1)
    return y + x_nchw


if __name__ == "__main__":
    key = jax.random.PRNGKey(0)
    kx, kw, kb = jax.random.split(key, 3)

    N, C, H, W = 2, 4, 16, 16
    x = jax.random.normal(kx, (N, C, H, W), dtype=jnp.float32)
    weight = jax.random.normal(kw, (C, C, 3, 3), dtype=jnp.float32) * 0.1
    bias = jax.random.normal(kb, (C,), dtype=jnp.float32) * 0.1

    out = residual_block(x, weight, bias)
    out = jax.block_until_ready(out)

    ref = _reference(x, weight, bias)
    assert out.shape == (N, C, H, W)
    # bf16 MXU operands -> slightly looser tolerance than a pure-f32 conv.
    max_err = float(jnp.max(jnp.abs(out - ref)))
    assert jnp.allclose(out, ref, atol=5e-2, rtol=5e-2), max_err

    print("KERNEL_OK")
</pallas_src>

<mosaic_0001>
module attributes {stable_mosaic.version = 11 : i64} {
  func.func @_roll_probe_kernel(%arg0: memref<8x128xf32, #tpu.memory_space<vmem>>, %arg1: memref<8x128xf32, #tpu.memory_space<vmem>>) attributes {dimension_semantics = [], scalar_prefetch = 0 : i64, scratch_operands = 0 : i64, tpu.core_type = #tpu.core_type<tc>} {
    %c0 = arith.constant 0 : index
    %c0_0 = arith.constant 0 : index
    %0 = vector.load %arg0[%c0, %c0_0] : memref<8x128xf32, #tpu.memory_space<vmem>>, vector<8x128xf32>
    %c1_i32 = arith.constant 1 : i32
    %1 = tpu.dynamic_rotate %0 by %c1_i32 dim 1 : vector<8x128xf32>, i32 -> vector<8x128xf32>
    %c0_1 = arith.constant 0 : index
    %c0_2 = arith.constant 0 : index
    %2 = vector.load %arg1[%c0_1, %c0_2] : memref<8x128xf32, #tpu.memory_space<vmem>>, vector<8x128xf32>
    tpu.vector_store %arg1[%c0_1, %c0_2], %1 {strides = array<i32>} : memref<8x128xf32, #tpu.memory_space<vmem>>, vector<8x128xf32>,
    return
  }
}

</mosaic_0001>

<llo_original>
// kernel: tpu_custom_call.1
$region0: #{tpu_custom_call.1}
  #allocation0 [shape = 'u32[]', space=smem, size = 0x4, offset = 0x4, fixed_abs, tag = 'smem constant byte address 0x4 - core index']
  #allocation1 [shape = 'u32[144,128]{1,0:T(1,128)}', space=vmem, size = 0x12000, scoped, tag = 'internal scratch']
  %s0 = inlined_call_operand.hbm [shape: f32[8,128], index: 0, kind: input, shape index: {}]
  %s1 = inlined_call_operand.hbm [shape: f32[8,128], index: 1, kind: output, shape index: {}]
  %s2 = sld [smem:[#allocation0]]
  $region18: #{tpu_custom_call.1} parent=0
    _
  %s4 = ssub.s32 1, %s2
  %s5 = scalar_select 0, %s4, %s2
  $region1: #{tpu_custom_call.1} parent=0
    #allocation2 [shape = 'u8[4096]{0}', space=vmem, size = 0x1000, scoped, tag = 'input window, operand 0, single buffered']
    #allocation3 [shape = 's32[1]{0}', space=sflag, size = 0x4, scoped, tag = 'scoped memory for tpu_custom_call.1']
    #allocation4 [shape = 's32[1]{0}', space=sflag, size = 0x4, scoped, tag = 'scoped memory for tpu_custom_call.1']
    #allocation5 [shape = 'u8[4096]{0}', space=vmem, size = 0x1000, scoped, tag = 'output window, operand 0, single buffered']
    %6 = vsyncpa [#allocation3], 0
    %7 = vsyncpa [#allocation4], 0
    // Predicated region
    $region2: #{tpu_custom_call.1} parent=1 // pred_check
      _
    $region3: #{tpu_custom_call.1} parent=1 // pred_check_branch
      %9 = sbr.rel (0) target = $region5
    $region4: #{tpu_custom_call.1} parent=1 // pred_region
      %s11 = ssub.s32 128, 128
      %12 = vsyncadd [#allocation3], %s11
      %s14 = sshll.u32 [#allocation2], 4
      %s15 = int_to_ptr.vmem [resolvable:$true] %s14
      %17 = dma.hbm_to_vmem [thread:$0]  %s0, 128, %s15, [#allocation3]
    $region5: #{tpu_custom_call.1} parent=1 // pred_fallthru
      _
    // Predicated region
    $region6: #{tpu_custom_call.1} parent=1 // pred_check
      _
    $region7: #{tpu_custom_call.1} parent=1 // pred_check_branch
      %19 = sbr.rel (0) target = $region9
    $region8: #{tpu_custom_call.1} parent=1 // pred_region
      %20 = dma.done [#allocation3], 128
    $region9: #{tpu_custom_call.1} parent=1 // pred_fallthru
      _
    %v21 = vld [vmem:[#allocation2] sm:$0xff]
    %22 = vrot.lane.b32.xlu0 %v21, 1
    %v23 = vpop.permute.xlu0 %22
    %24 = vst [vmem:[#allocation5] sm:$0xff] %v23
    // Predicated region
    $region10: #{tpu_custom_call.1} parent=1 // pred_check
      _
    $region11: #{tpu_custom_call.1} parent=1 // pred_check_branch
      %26 = sbr.rel (0) target = $region13
    $region12: #{tpu_custom_call.1} parent=1 // pred_region
      %s28 = ssub.s32 128, 128
      %29 = vsyncadd [#allocation4], %s28
      %s31 = sshll.u32 [#allocation5], 4
      %s32 = int_to_ptr.vmem [resolvable:$true] %s31
      %34 = dma.vmem_to_hbm [thread:$0]  %s32, 128, %s1, [#allocation4]
    $region13: #{tpu_custom_call.1} parent=1 // pred_fallthru
      _
    // Predicated region
    $region14: #{tpu_custom_call.1} parent=1 // pred_check
      _
    $region15: #{tpu_custom_call.1} parent=1 // pred_check_branch
      %36 = sbr.rel (0) target = $region17
    $region16: #{tpu_custom_call.1} parent=1 // pred_region
      %37 = dma.done [#allocation4], 128
    $region17: #{tpu_custom_call.1} parent=1 // pred_fallthru
      _
    %38 = vsyncpa [#allocation3], 1
    %39 = vsyncpa [#allocation4], 1

</llo_original>
